<compile_context>
chip_gen: v7x
topology: tpu7x:2x2x1
jax: 0.10.0
libtpu: 0.0.40
codegen_flags: <defaults>
</compile_context>

<pallas_src>
import jax
import jax.numpy as jnp
from jax.experimental import pallas as pl
from jax.experimental.pallas import tpu as pltpu


def model_kernel(x_ref, w_ref, o_ref):
    x = x_ref[...]                       # (A, B, D) f32
    wa = w_ref[0:1, :]                   # (1, D) = w1 * max(w2)  (static slice)
    wb = w_ref[1:2, :]                   # (1, D) = w1 * min(w2)

    # s[a, b] = <x[a, b, :], w1>  -- the two permutes compose to the identity
    # on the contraction, so no swapaxes / reshape is needed.
    sa = jnp.sum(x * wa, axis=-1)        # (A, B): VPU mul + lane reduce
    sb = jnp.sum(x * wb, axis=-1)        # (A, B)

    # max_d relu(s * w2[d]) == relu(max(s * max(w2), s * min(w2)))
    t = jnp.maximum(jnp.maximum(sa, sb), 0.0)          # (A, B)

    # out[a] = max_b t[a, b]
    o_ref[...] = jnp.max(t, axis=1, keepdims=True)     # (A, 1)


def prepare_weights(w1, w2):
    """Fold linear2's weight extrema into two pre-scaled copies of linear1's row.

    w1: (1, D) = Linear(24, 1).weight
    w2: (D, 1) = Linear(1, 24).weight
    Returns one (2, D) f32 buffer -> a single weight DMA into the kernel.
    """
    w2_max = jnp.max(w2)
    w2_min = jnp.min(w2)
    return jnp.concatenate([w1 * w2_max, w1 * w2_min], axis=0).astype(jnp.float32)


def model_forward(x, w1, w2, *, use_pallas=True):
    """x: (A, B, 24) f32, w1: (1, 24), w2: (24, 1). Returns (A,) f32."""
    A = x.shape[0]
    w = prepare_weights(w1, w2)          # built outside the kernel (review item 2/3)

    if not use_pallas:
        # Plain-jnp fused path: preferred at toy sizes where a Pallas custom
        # call is 100% dispatch / DMA-prologue bound (review item 1).
        sa = jnp.sum(x * w[0], axis=-1)
        sb = jnp.sum(x * w[1], axis=-1)
        return jnp.max(jnp.maximum(jnp.maximum(sa, sb), 0.0), axis=1)

    out = pl.pallas_call(
        model_kernel,
        out_shape=jax.ShapeDtypeStruct((A, 1), jnp.float32),
        in_specs=[pl.BlockSpec(memory_space=pltpu.MemorySpace.VMEM)] * 2,
        out_specs=pl.BlockSpec(memory_space=pltpu.MemorySpace.VMEM),
    )(x, w)
    return out[:, 0]


if __name__ == "__main__":
    key = jax.random.PRNGKey(0)
    kx, k1, k2 = jax.random.split(key, 3)

    A, B, D = 2, 2, 24
    x = jax.random.normal(kx, (A, B, D), dtype=jnp.float32)

    # Deterministic params mimicking nn.Linear init ranges.
    bound1 = 1.0 / jnp.sqrt(jnp.float32(D))
    w1 = jax.random.uniform(k1, (1, D), minval=-bound1, maxval=bound1,
                            dtype=jnp.float32)          # Linear(24, 1).weight
    w2 = jax.random.uniform(k2, (D, 1), minval=-1.0, maxval=1.0,
                            dtype=jnp.float32)          # Linear(1, 24).weight

    # Run the Pallas kernel once.
    out = jax.block_until_ready(model_forward(x, w1, w2, use_pallas=True))

    # Pure-JAX reference matching the PyTorch forward exactly.
    v1 = jnp.swapaxes(x, 0, 1)
    v2 = v1 @ w1.T
    v3 = jnp.swapaxes(v2, 0, 1)
    v4 = v3 @ w2.T
    v5 = jnp.maximum(v4, 0.0)
    ref = jnp.max(v5.reshape(A, -1), axis=1)

    assert out.shape == (A,)
    assert jnp.allclose(out, ref, atol=1e-5, rtol=1e-5)

    # Also check the recommended plain-jnp fused path stays consistent.
    out_jnp = model_forward(x, w1, w2, use_pallas=False)
    assert jnp.allclose(out_jnp, ref, atol=1e-5, rtol=1e-5)

    print("KERNEL_OK")
</pallas_src>

<mosaic_0001>
module attributes {stable_mosaic.version = 11 : i64} {
  func.func @model_kernel(%arg0: memref<2x2x24xf32, #tpu.memory_space<vmem>>, %arg1: memref<2x24xf32, #tpu.memory_space<vmem>>, %arg2: memref<2x1xf32, #tpu.memory_space<vmem>>) attributes {dimension_semantics = [], scalar_prefetch = 0 : i64, scratch_operands = 0 : i64, tpu.core_type = #tpu.core_type<tc>} {
    %c0 = arith.constant 0 : index
    %c0_0 = arith.constant 0 : index
    %c0_1 = arith.constant 0 : index
    %0 = vector.load %arg0[%c0, %c0_0, %c0_1] : memref<2x2x24xf32, #tpu.memory_space<vmem>>, vector<2x2x24xf32>
    %c0_2 = arith.constant 0 : index
    %c0_3 = arith.constant 0 : index
    %1 = vector.load %arg1[%c0_2, %c0_3] : memref<2x24xf32, #tpu.memory_space<vmem>>, vector<1x24xf32>
    %c1 = arith.constant 1 : index
    %c0_4 = arith.constant 0 : index
    %2 = vector.load %arg1[%c1, %c0_4] : memref<2x24xf32, #tpu.memory_space<vmem>>, vector<1x24xf32>
    %3 = vector.shape_cast %1 : vector<1x24xf32> to vector<1x1x24xf32>
    %4 = vector.broadcast %3 : vector<1x1x24xf32> to vector<2x2x24xf32>
    %5 = arith.mulf %0, %4 : vector<2x2x24xf32>
    %cst = arith.constant dense<0.000000e+00> : vector<2x2xf32>
    %6 = vector.multi_reduction <add>, %5, %cst [2] : vector<2x2x24xf32> to vector<2x2xf32>
    %7 = vector.shape_cast %2 : vector<1x24xf32> to vector<1x1x24xf32>
    %8 = vector.broadcast %7 : vector<1x1x24xf32> to vector<2x2x24xf32>
    %9 = arith.mulf %0, %8 : vector<2x2x24xf32>
    %cst_5 = arith.constant dense<0.000000e+00> : vector<2x2xf32>
    %10 = vector.multi_reduction <add>, %9, %cst_5 [2] : vector<2x2x24xf32> to vector<2x2xf32>
    %11 = arith.maximumf %6, %10 : vector<2x2xf32>
    %cst_6 = arith.constant 0.000000e+00 : f32
    %12 = vector.broadcast %cst_6 : f32 to vector<2x2xf32>
    %13 = arith.maximumf %11, %12 : vector<2x2xf32>
    %cst_7 = arith.constant dense<0xFF800000> : vector<2xf32>
    %14 = vector.multi_reduction <maximumf>, %13, %cst_7 [1] : vector<2x2xf32> to vector<2xf32>
    %15 = vector.shape_cast %14 : vector<2xf32> to vector<2x1xf32>
    %c0_8 = arith.constant 0 : index
    %c0_9 = arith.constant 0 : index
    %16 = vector.load %arg2[%c0_8, %c0_9] : memref<2x1xf32, #tpu.memory_space<vmem>>, vector<2x1xf32>
    tpu.vector_store %arg2[%c0_8, %c0_9], %15 {strides = array<i32>} : memref<2x1xf32, #tpu.memory_space<vmem>>, vector<2x1xf32>,
    return
  }
}

</mosaic_0001>

<llo_original>
// kernel: tpu_custom_call.1
$region0: #{tpu_custom_call.1}
  #allocation0 [shape = 'u32[]', space=smem, size = 0x4, offset = 0x4, fixed_abs, tag = 'smem constant byte address 0x4 - core index']
  #allocation1 [shape = 'u32[144,128]{1,0:T(1,128)}', space=vmem, size = 0x12000, scoped, tag = 'internal scratch']
  %s0 = inlined_call_operand.hbm [shape: f32[2,2,24], index: 0, kind: input, shape index: {}]
  %s1 = inlined_call_operand.vmem [shape: f32[2,24], index: 1, kind: input, shape index: {}]
  %s2 = inlined_call_operand.vmem [shape: f32[2,1], index: 2, kind: output, shape index: {}]
  %s3 = sld [smem:[#allocation0]]
  $region22: #{tpu_custom_call.1} parent=0
    _
  %s5 = ssub.s32 1, %s3
  %s6 = scalar_select 0, %s5, %s3
  $region1: #{tpu_custom_call.1} parent=0
    #allocation2 [shape = 'u8[2048]{0}', space=vmem, size = 0x800, scoped, tag = 'input window, operand 0, single buffered']
    #allocation3 [shape = 's32[1]{0}', space=sflag, size = 0x4, scoped, tag = 'scoped memory for tpu_custom_call.1']
    %7 = vsyncpa [#allocation3], 0
    // Predicated region
    $region2: #{tpu_custom_call.1} parent=1 // pred_check
      _
    $region3: #{tpu_custom_call.1} parent=1 // pred_check_branch
      %9 = sbr.rel (0) target = $region5
    $region4: #{tpu_custom_call.1} parent=1 // pred_region
      %s11 = ssub.s32 64, 64
      %12 = vsyncadd [#allocation3], %s11
      %s13 = sshll.u32 [#allocation2], 4
      %s14 = int_to_ptr.vmem [resolvable:$true] %s13
      %19 = dma.hbm_to_vmem [thread:$0]  %s0, 64, %s14, [#allocation3], 32, 32, 2
    $region5: #{tpu_custom_call.1} parent=1 // pred_fallthru
      _
    // Predicated region
    $region6: #{tpu_custom_call.1} parent=1 // pred_check
      _
    $region7: #{tpu_custom_call.1} parent=1 // pred_check_branch
      %21 = sbr.rel (0) target = $region9
    $region8: #{tpu_custom_call.1} parent=1 // pred_region
      _
    $region9: #{tpu_custom_call.1} parent=1 // pred_fallthru
      _
    // Predicated region
    $region10: #{tpu_custom_call.1} parent=1 // pred_check
      _
    $region11: #{tpu_custom_call.1} parent=1 // pred_check_branch
      %23 = sbr.rel (0) target = $region13
    $region12: #{tpu_custom_call.1} parent=1 // pred_region
      %24 = dma.done [#allocation3], 64
    $region13: #{tpu_custom_call.1} parent=1 // pred_fallthru
      _
    %v25 = vld [vmem:[#allocation2] sm:$0x3]
    %v26 = vld [vmem:[#allocation2 + $0x2] sm:$0x3]
    %v27 = vld [vmem:[%s1] sm:$0x1]
    %v28 = vld [vmem:[%s1 + $0x1] sm:$0x1]
    %v29 = vlaneseq
    %v30 = vshrl.u32 %v29, 7
    %v31 = vsub.s32 0, %v30
    %v32 = vrot.slane %v27, %v31
    %v33 = vmul.f32 %v25, %v32
    %v34 = vmul.f32 %v26, %v32
    %vm35 = vcmask 189440
    %v36 = vsel %vm35, %v33, 0.0
    %37 = vadd.xlane.f32.xlu0 %v36
    %v38 = vpop.xlane.xlu0 %37
    %v39 = vsel %vm35, %v34, 0.0
    %40 = vadd.xlane.f32.xlu0 %v39
    %v41 = vpop.xlane.xlu0 %40
    %v42 = vlaneseq
    %v43 = vshrl.u32 %v42, 7
    %v44 = vsub.s32 0, %v43
    %v45 = vrot.slane %v28, %v44
    %v46 = vmul.f32 %v25, %v45
    %v47 = vmul.f32 %v26, %v45
    %v48 = vsel %vm35, %v46, 0.0
    %49 = vadd.xlane.f32.xlu0 %v48
    %v50 = vpop.xlane.xlu0 %49
    %v51 = vsel %vm35, %v47, 0.0
    %52 = vadd.xlane.f32.xlu0 %v51
    %v53 = vpop.xlane.xlu0 %52
    %v54 = vmax.f32 %v38, %v50
    %v55 = vmax.f32 %v41, %v53
    %v56 = vmax.f32 %v54, 0.0
    %v57 = vmax.f32 %v55, 0.0
    %v60 = vlaneseq
    %v61 = vand.u32 %v60, 127
    %v62 = vlaneseq
    %v63 = vshrl.u32 %v62, 7
    %v64 = vsub.s32 %v61, %v63
    %v65 = vrot.slane %v56, %v64
    %v66 = vlaneseq
    %v67 = vshrl.u32 %v66, 7
    %v68 = vsub.s32 %v61, %v67
    %v69 = vrot.slane %v57, %v68
    %vm70 = vcmask 1041409
    %v71 = vsel %vm70, %v69, %v65
    %vm73 = vcmask 9216
    %v74 = vsel %vm73, %v71, -inf
    %75 = vmax.xlane.f32.xlu0 %v74
    %v76 = vpop.xlane.xlu0 %75
    %vm77 = vcmask 1024
    %78 = vst.msk [vmem:[%s2] sm:$0x3] %vm77, %v76
    // Predicated region
    $region14: #{tpu_custom_call.1} parent=1 // pred_check
      _
    $region15: #{tpu_custom_call.1} parent=1 // pred_check_branch
      %80 = sbr.rel (0) target = $region17
    $region16: #{tpu_custom_call.1} parent=1 // pred_region
      _
    $region17: #{tpu_custom_call.1} parent=1 // pred_fallthru
      _
    // Predicated region
    $region18: #{tpu_custom_call.1} parent=1 // pred_check
      _
    $region19: #{tpu_custom_call.1} parent=1 // pred_check_branch
      %82 = sbr.rel (0) target = $region21
    $region20: #{tpu_custom_call.1} parent=1 // pred_region
      _
    $region21: #{tpu_custom_call.1} parent=1 // pred_fallthru
      _
    %83 = vsyncpa [#allocation3], 1

</llo_original>
